<compile_context>
chip_gen: v6e
topology: v6e:2x2x1
jax: 0.10.0
libtpu: 0.0.40
codegen_flags: <defaults>
</compile_context>

<pallas_src>
import jax
import jax.numpy as jnp
from jax.experimental import pallas as pl
from jax.experimental.pallas import tpu as pltpu

# Fixed row order of the input metric matrix (dict -> dense glue).
METRIC_NAMES = ("pnl", "drawdown", "trade_frequency")

# Full RewardComponents field order (dict-of-arrays is returned in this order).
COMPONENT_NAMES = (
    "basic_pnl", "risk_penalty", "trade_frequency", "sharpe_ratio",
    "max_drawdown", "win_rate", "sortino_ratio", "var_risk", "skewness",
    "kurtosis", "transaction_costs", "consistency_bonus", "learning_bonus",
    "total_reward",
)
# Rows actually produced by Stage1 (compact kernel output, in this order).
LIVE_NAMES = ("basic_pnl", "risk_penalty", "trade_frequency", "total_reward")
_N_LIVE = len(LIVE_NAMES)

# Module "parameters" (deterministic constants, no learnable tensors).
_PNL_W, _RISK_W, _FREQ_W = 0.7, 0.2, 0.1

# Tiling knobs.
_MAX_TB = 65536          # lane-dense batch tile cap (multiple of 128)
_PALLAS_MIN_BATCH = 1024  # below this, fused pure-JAX is faster than a launch


def _stage1_reward_kernel(m_ref, o_ref):
    # m_ref: (3, TB) feature-major tile, batch fully lane-dense.
    # Read rows straight from the ref (no (3,TB) materialize-then-slice).
    pnl = m_ref[0:1, :].astype(jnp.float32)   # (1, TB)
    dd = m_ref[1:2, :].astype(jnp.float32)
    tf = m_ref[2:3, :].astype(jnp.float32)

    # basic_pnl = tanh(pnl * 5) * 0.7            (tanh rides the EUP slot)
    basic_pnl = jnp.tanh(pnl * 5.0) * _PNL_W

    # risk_penalty: dd > 0.1 -> -2.0*w ; dd > 0.05 -> -0.5*w ; else 0.5*w
    risk_pen = jnp.where(
        dd > 0.1, -2.0 * _RISK_W,
        jnp.where(dd > 0.05, -0.5 * _RISK_W, 0.5 * _RISK_W))

    # trade_frequency: tf > 0.15 -> -1.0*w ; tf < 0.02 -> -0.5*w ; else 0.3*w
    trade_freq = jnp.where(
        tf > 0.15, -1.0 * _FREQ_W,
        jnp.where(tf < 0.02, -0.5 * _FREQ_W, 0.3 * _FREQ_W))

    # learning_bonus is a local temp in PyTorch: it contributes to the total
    # but components.learning_bonus is never assigned (stays 0.0).
    learn_local = (jnp.where(pnl > -0.02, 0.1, 0.0)
                   + jnp.where(dd < 0.08, 0.05, 0.0))

    total = basic_pnl + risk_pen + trade_freq + learn_local

    # One contiguous (4, TB) lane-dense store of the live rows only.
    o_ref[...] = jnp.concatenate(
        [basic_pnl, risk_pen, trade_freq, total], axis=0).astype(o_ref.dtype)


def _pick_block_batch(B: int) -> int:
    """Lane-dense batch tile: big (DMA-efficient), multiple of 128, and at
    least 2 grid blocks when B allows (so v7x's two TensorCores both work)."""
    half = -(-B // 2)                       # ceil(B / 2)
    tb = min(_MAX_TB, max(128, half))
    return -(-tb // 128) * 128              # round up to a lane multiple


def _stage1_compact_pallas(metrics_fb: jax.Array) -> jax.Array:
    """metrics_fb: [3, B] feature-major -> live components: float32 [4, B]."""
    F, B = metrics_fb.shape
    assert F == len(METRIC_NAMES)

    TB = _pick_block_batch(B)
    num_blocks = pl.cdiv(B, TB)   # ragged last tile is clipped by Mosaic

    return pl.pallas_call(
        _stage1_reward_kernel,
        out_shape=jax.ShapeDtypeStruct((_N_LIVE, B), jnp.float32),
        grid=(num_blocks,),
        in_specs=[pl.BlockSpec((F, TB), lambda i: (0, i))],
        out_specs=pl.BlockSpec((_N_LIVE, TB), lambda i: (0, i)),
        compiler_params=pltpu.CompilerParams(
            dimension_semantics=("parallel",)),
    )(metrics_fb)


def _stage1_compact_reference(metrics_fb: jax.Array) -> jax.Array:
    """Pure-JAX mirror of the PyTorch forward ([3,B] -> live rows [4,B])."""
    pnl = metrics_fb[0].astype(jnp.float32)
    dd = metrics_fb[1].astype(jnp.float32)
    tf = metrics_fb[2].astype(jnp.float32)
    basic = jnp.tanh(pnl * 5.0) * _PNL_W
    risk = jnp.where(dd > 0.1, -2.0 * _RISK_W,
                     jnp.where(dd > 0.05, -0.5 * _RISK_W, 0.5 * _RISK_W))
    freq = jnp.where(tf > 0.15, -1.0 * _FREQ_W,
                     jnp.where(tf < 0.02, -0.5 * _FREQ_W, 0.3 * _FREQ_W))
    lb = jnp.where(pnl > -0.02, 0.1, 0.0) + jnp.where(dd < 0.08, 0.05, 0.0)
    total = basic + risk + freq + lb
    return jnp.stack([basic, risk, freq, total], axis=0)


def stage1_basic_reward(metrics_fb: jax.Array, use_pallas=None):
    """Batched Stage1BasicReward.

    metrics_fb: float [3, B] feature-major rows = (pnl, drawdown, trade_frequency)
    Returns: dict mapping every RewardComponents field -> float32 [B] array.
    The 10 fields Stage1 never assigns share one lazily-created zeros array
    (the dense [14, B] is never materialized).
    """
    F, B = metrics_fb.shape
    assert F == len(METRIC_NAMES)

    if use_pallas is None:
        use_pallas = B >= _PALLAS_MIN_BATCH
    live = (_stage1_compact_pallas(metrics_fb) if use_pallas
            else _stage1_compact_reference(metrics_fb))

    zeros = jnp.zeros((B,), jnp.float32)
    comps = {name: zeros for name in COMPONENT_NAMES}
    for i, name in enumerate(LIVE_NAMES):
        comps[name] = live[i]
    return comps
    # TODO(synk): dict-of-floats input / RewardComponents dataclass output is
    # host-side glue; the kernel works on the dense [3, B] metric rows only.


if __name__ == "__main__":
    key = jax.random.PRNGKey(0)
    # Moderately small batch that still takes the Pallas path; not a multiple
    # of the tile, so it also exercises the clipped ragged last block and the
    # >=2-block (v7x megacore) grid.
    B = 3000

    k1, k2, k3 = jax.random.split(key, 3)
    # Plausible metric magnitudes: pnl ~ +/- a few %, drawdown / trade_freq
    # spread across the threshold branches.
    pnl = jax.random.normal(k1, (B,), dtype=jnp.float32) * 0.05
    drawdown = jnp.abs(jax.random.normal(k2, (B,), dtype=jnp.float32)) * 0.08
    trade_freq = jnp.abs(jax.random.normal(k3, (B,), dtype=jnp.float32)) * 0.1
    metrics_fb = jnp.stack([pnl, drawdown, trade_freq], axis=0)  # [3, B]

    comps = stage1_basic_reward(metrics_fb)          # Pallas path (B >= 1024)
    comps = jax.block_until_ready(comps)

    ref = _stage1_compact_reference(metrics_fb)
    for i, name in enumerate(LIVE_NAMES):
        assert comps[name].shape == (B,)
        assert jnp.allclose(comps[name], ref[i], atol=1e-6, rtol=1e-6), name
    for name in COMPONENT_NAMES:
        if name not in LIVE_NAMES:
            assert bool(jnp.all(comps[name] == 0.0)), name

    # Small-batch fast path (pure-JAX dispatch) stays consistent too.
    small = stage1_basic_reward(metrics_fb[:, :64])
    small = jax.block_until_ready(small)
    assert jnp.allclose(small["total_reward"], ref[3, :64], atol=1e-6)

    print("KERNEL_OK")
</pallas_src>

<mosaic_0001>
module attributes {stable_mosaic.version = 11 : i64} {
  func.func @_stage1_reward_kernel(%arg0: i32, %arg1: memref<3x1536xf32, #tpu.memory_space<vmem>>, %arg2: memref<4x1536xf32, #tpu.memory_space<vmem>>) attributes {dimension_semantics = [#tpu.dimension_semantics<parallel>], iteration_bounds = array<i64: 2>, scalar_prefetch = 0 : i64, scratch_operands = 0 : i64, tpu.core_type = #tpu.core_type<tc>, window_params = [{transform_indices = @transform_0, window_bounds = array<i64: 3, 1536>}, {transform_indices = @transform_1, window_bounds = array<i64: 4, 1536>}]} {
    %c0 = arith.constant 0 : index
    %c0_0 = arith.constant 0 : index
    %0 = vector.load %arg1[%c0, %c0_0] : memref<3x1536xf32, #tpu.memory_space<vmem>>, vector<1x1536xf32>
    %c1 = arith.constant 1 : index
    %c0_1 = arith.constant 0 : index
    %1 = vector.load %arg1[%c1, %c0_1] : memref<3x1536xf32, #tpu.memory_space<vmem>>, vector<1x1536xf32>
    %c2 = arith.constant 2 : index
    %c0_2 = arith.constant 0 : index
    %2 = vector.load %arg1[%c2, %c0_2] : memref<3x1536xf32, #tpu.memory_space<vmem>>, vector<1x1536xf32>
    %cst = arith.constant 5.000000e+00 : f32
    %3 = vector.broadcast %cst : f32 to vector<1x1536xf32>
    %4 = arith.mulf %0, %3 : vector<1x1536xf32>
    %5 = math.tanh %4 : vector<1x1536xf32>
    %cst_3 = arith.constant 0.699999988 : f32
    %6 = vector.broadcast %cst_3 : f32 to vector<1x1536xf32>
    %7 = arith.mulf %5, %6 : vector<1x1536xf32>
    %cst_4 = arith.constant 1.000000e-01 : f32
    %8 = vector.broadcast %cst_4 : f32 to vector<1x1536xf32>
    %9 = arith.cmpf ogt, %1, %8 : vector<1x1536xf32>
    %cst_5 = arith.constant 5.000000e-02 : f32
    %10 = vector.broadcast %cst_5 : f32 to vector<1x1536xf32>
    %11 = arith.cmpf ogt, %1, %10 : vector<1x1536xf32>
    %cst_6 = arith.constant -1.000000e-01 : f32
    %cst_7 = arith.constant 1.000000e-01 : f32
    %12 = vector.broadcast %cst_6 : f32 to vector<1x1536xf32>
    %13 = vector.broadcast %cst_7 : f32 to vector<1x1536xf32>
    %14 = arith.select %11, %12, %13 : vector<1x1536xi1>, vector<1x1536xf32>
    %cst_8 = arith.constant -4.000000e-01 : f32
    %15 = vector.broadcast %cst_8 : f32 to vector<1x1536xf32>
    %16 = arith.select %9, %15, %14 : vector<1x1536xi1>, vector<1x1536xf32>
    %cst_9 = arith.constant 1.500000e-01 : f32
    %17 = vector.broadcast %cst_9 : f32 to vector<1x1536xf32>
    %18 = arith.cmpf ogt, %2, %17 : vector<1x1536xf32>
    %cst_10 = arith.constant 2.000000e-02 : f32
    %19 = vector.broadcast %cst_10 : f32 to vector<1x1536xf32>
    %20 = arith.cmpf olt, %2, %19 : vector<1x1536xf32>
    %cst_11 = arith.constant -5.000000e-02 : f32
    %cst_12 = arith.constant 3.000000e-02 : f32
    %21 = vector.broadcast %cst_11 : f32 to vector<1x1536xf32>
    %22 = vector.broadcast %cst_12 : f32 to vector<1x1536xf32>
    %23 = arith.select %20, %21, %22 : vector<1x1536xi1>, vector<1x1536xf32>
    %cst_13 = arith.constant -1.000000e-01 : f32
    %24 = vector.broadcast %cst_13 : f32 to vector<1x1536xf32>
    %25 = arith.select %18, %24, %23 : vector<1x1536xi1>, vector<1x1536xf32>
    %cst_14 = arith.constant -2.000000e-02 : f32
    %26 = vector.broadcast %cst_14 : f32 to vector<1x1536xf32>
    %27 = arith.cmpf ogt, %0, %26 : vector<1x1536xf32>
    %cst_15 = arith.constant 1.000000e-01 : f32
    %cst_16 = arith.constant 0.000000e+00 : f32
    %28 = vector.broadcast %cst_15 : f32 to vector<1x1536xf32>
    %29 = vector.broadcast %cst_16 : f32 to vector<1x1536xf32>
    %30 = arith.select %27, %28, %29 : vector<1x1536xi1>, vector<1x1536xf32>
    %cst_17 = arith.constant 8.000000e-02 : f32
    %31 = vector.broadcast %cst_17 : f32 to vector<1x1536xf32>
    %32 = arith.cmpf olt, %1, %31 : vector<1x1536xf32>
    %cst_18 = arith.constant 5.000000e-02 : f32
    %cst_19 = arith.constant 0.000000e+00 : f32
    %33 = vector.broadcast %cst_18 : f32 to vector<1x1536xf32>
    %34 = vector.broadcast %cst_19 : f32 to vector<1x1536xf32>
    %35 = arith.select %32, %33, %34 : vector<1x1536xi1>, vector<1x1536xf32>
    %36 = arith.addf %30, %35 : vector<1x1536xf32>
    %37 = arith.addf %7, %16 : vector<1x1536xf32>
    %38 = arith.addf %37, %25 : vector<1x1536xf32>
    %39 = arith.addf %38, %36 : vector<1x1536xf32>
    %40 = tpu.concatenate %7, %16, %25, %39 in 0 : vector<1x1536xf32>, vector<1x1536xf32>, vector<1x1536xf32>, vector<1x1536xf32> -> vector<4x1536xf32>
    %c0_20 = arith.constant 0 : index
    %c0_21 = arith.constant 0 : index
    %41 = vector.load %arg2[%c0_20, %c0_21] : memref<4x1536xf32, #tpu.memory_space<vmem>>, vector<4x1536xf32>
    tpu.vector_store %arg2[%c0_20, %c0_21], %40 {strides = array<i32>} : memref<4x1536xf32, #tpu.memory_space<vmem>>, vector<4x1536xf32>,
    return
  }
  func.func @transform_0(%arg0: i32) -> (i32, i32) {
    %c0_i32 = arith.constant 0 : i32
    %c0_i32_0 = arith.constant 0 : i32
    return %c0_i32, %arg0 : i32, i32
  }
  func.func @transform_1(%arg0: i32) -> (i32, i32) {
    %c0_i32 = arith.constant 0 : i32
    %c0_i32_0 = arith.constant 0 : i32
    return %c0_i32, %arg0 : i32, i32
  }
}

</mosaic_0001>

<llo_original>
// kernel: tpu_custom_call.1
$region0: #{tpu_custom_call.1}
  #allocation0 [shape = 'u32[]', space=smem, size = 0x4, offset = 0x4, fixed_abs, tag = 'smem constant byte address 0x4 - core index']
  #allocation1 [shape = 'u32[144,128]{1,0:T(1,128)}', space=vmem, size = 0x12000, scoped, tag = 'internal scratch']
  %s0 = inlined_call_operand.hbm [shape: f32[3,3000], index: 0, kind: input, shape index: {}]
  %s1 = inlined_call_operand.hbm [shape: f32[4,3000], index: 1, kind: output, shape index: {}]
  %s2 = sld [smem:[#allocation0]]
  $region41: #{tpu_custom_call.1} parent=0
    _
  %s4 = ssub.s32 1, %s2
  %s5 = scalar_select 0, %s4, %s2
  $region1: #{tpu_custom_call.1} parent=0
    #allocation2 [shape = 'u8[49152]{0}', space=vmem, size = 0xc000, scoped, tag = 'input window, operand 0']
    #allocation3 [shape = 's32[2]{0}', space=sflag, size = 0x8, scoped, tag = 'scoped memory for tpu_custom_call.1']
    #allocation4 [shape = 's32[2]{0}', space=sflag, size = 0x8, scoped, tag = 'scoped memory for tpu_custom_call.1']
    #allocation5 [shape = 'u8[49152]{0}', space=vmem, size = 0xc000, scoped, tag = 'output window, operand 0']
    %6 = vsyncpa [#allocation3], 0
    %s7 = scalar_lea.sflag [#allocation3], 1
    %8 = vsyncpa %s7, 0
    %9 = vsyncpa [#allocation4], 0
    %s10 = scalar_lea.sflag [#allocation4], 1
    %11 = vsyncpa %s10, 0
    loop: start=0, step=1, limit=4
    $region2: #{tpu_custom_call.1} parent=1 // loop_pre_header
      _
    $region3: #{tpu_custom_call.1} parent=1 // loop_header
      %s13 = sphi 0, %s17
      %p14 = scmp.ge.s32.totalorder %s13, 4
      %s23 = sphi 0, %s25
      %s26 = sphi 0, %s23
      %s27 = sphi 0, %s26
      %s43 = sphi 0, %s27
      %s49 = sphi 0, %s51
      %s52 = sphi 0, %s49
      %s53 = sphi 0, %s52
      %s69 = sphi 0, %s53
    $region4: #{tpu_custom_call.1} parent=1 // loop_header_branch
      %16 = sbr.rel (%p14) target = $region8
    $region5: #{tpu_custom_call.1} parent=1 // loop_body
      %s18 = ssub.s32 %s13, 1
      %s19 = ssub.s32 %s13, 2
      %s20 = sadd.s32 %s13, 1
      %s21 = ssub.s32 %s13, %s20
      %p22 = scmp.eq.s32.totalorder %s21, 0
      %s24 = sadd.s32 %s23, 1
      %s25 = scalar_select %p22, %s23, %s24
      %p28 = pneg %p22
      %p29 = scmp.eq.s32.totalorder %s13, 1
      %p30 = por %p28, %p29
      %p31 = scmp.ne.s32.totalorder %s23, %s26
      %p32 = scmp.eq.s32.totalorder %s13, 0
      %p33 = por %p31, %p32
      %p34 = scmp.ne.s32.totalorder %s23, %s26
      %p35 = scmp.eq.s32.totalorder %s18, 1
      %p36 = por %p34, %p35
      %p37 = scmp.ne.s32.totalorder %s26, %s27
      %p38 = scmp.eq.s32.totalorder %s18, 0
      %p39 = por %p37, %p38
      %p40 = scmp.ne.s32.totalorder %s26, %s27
      %p41 = scmp.eq.s32.totalorder %s19, 1
      %p42 = por %p40, %p41
      %p44 = scmp.ne.s32.totalorder %s27, %s43
      %p45 = scmp.eq.s32.totalorder %s19, 0
      %p46 = por %p44, %p45
      %s47 = ssub.s32 %s13, %s20
      %p48 = scmp.eq.s32.totalorder %s47, 0
      %s50 = sadd.s32 %s49, 1
      %s51 = scalar_select %p48, %s49, %s50
      %p54 = pneg %p48
      %p55 = scmp.eq.s32.totalorder %s13, 1
      %p56 = por %p54, %p55
      %p57 = scmp.ne.s32.totalorder %s49, %s52
      %p58 = scmp.eq.s32.totalorder %s13, 0
      %p59 = por %p57, %p58
      %p60 = scmp.ne.s32.totalorder %s49, %s52
      %p61 = scmp.eq.s32.totalorder %s18, 1
      %p62 = por %p60, %p61
      %p63 = scmp.ne.s32.totalorder %s52, %s53
      %p64 = scmp.eq.s32.totalorder %s18, 0
      %p65 = por %p63, %p64
      %p66 = scmp.ne.s32.totalorder %s52, %s53
      %p67 = scmp.eq.s32.totalorder %s19, 1
      %p68 = por %p66, %p67
      %p70 = scmp.ne.s32.totalorder %s53, %s69
      %p71 = scmp.eq.s32.totalorder %s19, 0
      %p72 = por %p70, %p71
      %p73 = scmp.le.s32.totalorder 1, %s13
      %p74 = scmp.lt.s32.totalorder %s13, 3
      %p75 = pnand %p73, %p74
      %p76 = pneg %p75
      // Predicated region
      $region9: #{tpu_custom_call.1} parent=5 // pred_check
        _
      $region10: #{tpu_custom_call.1} parent=5 // pred_check_branch
        %78 = sbr.rel (%p75) target = $region12
      $region11: #{tpu_custom_call.1} parent=5 // pred_region
        %s79 = ssub.s32 %s13, 1
      $region12: #{tpu_custom_call.1} parent=5 // pred_fallthru
        _
      %p80 = scmp.lt.s32.totalorder %s13, 2
      // Predicated region
      $region13: #{tpu_custom_call.1} parent=5 // pred_check
        %p81 = pneg %p80
      $region14: #{tpu_custom_call.1} parent=5 // pred_check_branch
        %83 = sbr.rel (%p81) target = $region16
      $region15: #{tpu_custom_call.1} parent=5 // pred_region
        // Predicated region
        $region17: #{tpu_custom_call.1} parent=15 // pred_check
          %p84 = pneg %p33
        $region18: #{tpu_custom_call.1} parent=15 // pred_check_branch
          %86 = sbr.rel (%p84) target = $region20
        $region19: #{tpu_custom_call.1} parent=15 // pred_region
          %s87 = sand.u32 %s23, 1
          %s88 = scalar_lea.sflag [#allocation3], %s87
          %s89 = sand.u32 %s23, 1
          %s90 = smul.addr %s89, 48
          %s91 = scalar_lea.vmem [#allocation2], %s90
          %s92 = smul.u32 12, %s13
          %s94 = ssub.s32 768, 768
          %95 = vsyncadd %s88, %s94
          %s96 = smul.addr %s92, 64
          %s97 = scalar_lea.hbm %s0, %s96
          %s99 = sshll.u32 %s91, 4
          %s100 = int_to_ptr.vmem [resolvable:$true] %s99
          %102 = dma.hbm_to_vmem [thread:$0]  %s97, 768, %s100, %s88
        $region20: #{tpu_custom_call.1} parent=15 // pred_fallthru
          _
      $region16: #{tpu_custom_call.1} parent=5 // pred_fallthru
        _
      %p103 = scmp.le.s32.totalorder 1, %s13
      %p104 = scmp.lt.s32.totalorder %s13, 3
      %p105 = pnand %p103, %p104
      %p106 = pneg %p105
      // Predicated region
      $region21: #{tpu_custom_call.1} parent=5 // pred_check
        _
      $region22: #{tpu_custom_call.1} parent=5 // pred_check_branch
        %108 = sbr.rel (%p105) target = $region24
      $region23: #{tpu_custom_call.1} parent=5 // pred_region
        %s109 = ssub.s32 %s13, 1
        %s110 = sand.u32 %s26, 1
        %s111 = scalar_lea.sflag [#allocation3], %s110
        %s112 = sand.u32 %s26, 1
        %s113 = smul.addr %s112, 48
        %s114 = scalar_lea.vmem [#allocation2], %s113
        // Predicated region
        $region25: #{tpu_custom_call.1} parent=23 // pred_check
          %p115 = pneg %p39
        $region26: #{tpu_custom_call.1} parent=23 // pred_check_branch
          %117 = sbr.rel (%p115) target = $region28
        $region27: #{tpu_custom_call.1} parent=23 // pred_region
          %118 = dma.done %s111, 768
        $region28: #{tpu_custom_call.1} parent=23 // pred_fallthru
          _
        %s119 = sand.u32 %s26, 1
        %s120 = scalar_lea.sflag [#allocation3], %s119
        %s121 = sand.u32 %s26, 1
        %s122 = smul.addr %s121, 48
        %s123 = scalar_lea.vmem [#allocation2], %s122
        %p124 = pneg %p39
        %p125 = pneg %p36
        %p126 = pneg %p65
        %p127 = pneg %p62
        %s128 = sand.u32 %s52, 1
        %s129 = scalar_lea.sflag [#allocation4], %s128
        %s130 = sand.u32 %s52, 1
        %s131 = smul.addr %s130, 48
        %s132 = scalar_lea.vmem [#allocation5], %s131
        %s133 = smul.u32 12, %s18
        %s134 = smul.u32 12, %s18
        %v135 = vld [vmem:[%s114] ss:$4 sm:$0xff]
        %s136 = scalar_lea.vmem %s114, 32 [#allocation2]
        %v137 = vld [vmem:[%s136] ss:$4 sm:$0xf]
        %s138 = scalar_lea.vmem %s114, 1 [#allocation2]
        %v139 = vld [vmem:[%s138] ss:$4 sm:$0xff]
        %s140 = scalar_lea.vmem %s114, 33 [#allocation2]
        %v141 = vld [vmem:[%s140] ss:$4 sm:$0xf]
        %s142 = scalar_lea.vmem %s114, 2 [#allocation2]
        %v143 = vld [vmem:[%s142] ss:$4 sm:$0xff]
        %s144 = scalar_lea.vmem %s114, 34 [#allocation2]
        %v145 = vld [vmem:[%s144] ss:$4 sm:$0xf]
        %v146 = vmul.f32 %v135, 5.0
        %v147 = vmul.f32 %v137, 5.0
        %v148 = vtanh.pop %v146
        %v149 = vtanh.pop %v147
        %v150 = vmul.f32 %v148, 0.7
        %v151 = vmul.f32 %v149, 0.7
        %vm152 = vcmp.gt.f32.partialorder %v139, 0.1
        %vm153 = vcmp.gt.f32.partialorder %v141, 0.1
        %vm154 = vcmp.gt.f32.partialorder %v139, 0.05
        %vm155 = vcmp.gt.f32.partialorder %v141, 0.05
        %v156 = vsel %vm154, -0.1, 0.1
        %v157 = vsel %vm155, -0.1, 0.1
        %v158 = vsel %vm152, -0.4, %v156
        %v159 = vsel %vm153, -0.4, %v157
        %vm160 = vcmp.gt.f32.partialorder %v143, 0.15
        %vm161 = vcmp.gt.f32.partialorder %v145, 0.15
        %vm162 = vcmp.lt.f32.partialorder %v143, 0.02
        %vm163 = vcmp.lt.f32.partialorder %v145, 0.02
        %v164 = vsel %vm162, -0.05, 0.03
        %v165 = vsel %vm163, -0.05, 0.03
        %v166 = vsel %vm160, -0.1, %v164
        %v167 = vsel %vm161, -0.1, %v165
        %vm168 = vcmp.gt.f32.partialorder %v135, -0.02
        %vm169 = vcmp.gt.f32.partialorder %v137, -0.02
        %v170 = vsel %vm168, 0.1, 0.0
        %v171 = vsel %vm169, 0.1, 0.0
        %vm172 = vcmp.lt.f32.partialorder %v139, 0.08
        %vm173 = vcmp.lt.f32.partialorder %v141, 0.08
        %v174 = vsel %vm172, 0.05, 0.0
        %v175 = vsel %vm173, 0.05, 0.0
        %v176 = vadd.f32 %v170, %v174
        %v177 = vadd.f32 %v171, %v175
        %v178 = vadd.f32 %v150, %v158
        %v179 = vadd.f32 %v151, %v159
        %v180 = vadd.f32 %v178, %v166
        %v181 = vadd.f32 %v179, %v167
        %v182 = vadd.f32 %v180, %v176
        %v183 = vadd.f32 %v181, %v177
        %v186 = vlaneseq
        %v187 = vshrl.u32 %v186, 7
        %v188 = vsub.s32 0, %v187
        %v189 = vrot.slane %v150, %v188
        %v190 = vlaneseq
        %v191 = vshrl.u32 %v190, 7
        %v192 = vsub.s32 1, %v191
        %v193 = vrot.slane %v150, %v192
        %v194 = vlaneseq
        %v195 = vshrl.u32 %v194, 7
        %v196 = vsub.s32 2, %v195
        %v197 = vrot.slane %v150, %v196
        %v198 = vlaneseq
        %v199 = vshrl.u32 %v198, 7
        %v200 = vsub.s32 3, %v199
        %v201 = vrot.slane %v150, %v200
        %v202 = vlaneseq
        %v203 = vshrl.u32 %v202, 7
        %v204 = vsub.s32 4, %v203
        %v205 = vrot.slane %v150, %v204
        %v206 = vlaneseq
        %v207 = vshrl.u32 %v206, 7
        %v208 = vsub.s32 5, %v207
        %v209 = vrot.slane %v150, %v208
        %v210 = vlaneseq
        %v211 = vshrl.u32 %v210, 7
        %v212 = vsub.s32 6, %v211
        %v213 = vrot.slane %v150, %v212
        %v214 = vlaneseq
        %v215 = vshrl.u32 %v214, 7
        %v216 = vsub.s32 7, %v215
        %v217 = vrot.slane %v150, %v216
        %v218 = vlaneseq
        %v219 = vshrl.u32 %v218, 7
        %v220 = vsub.s32 0, %v219
        %v221 = vrot.slane %v151, %v220
        %v222 = vlaneseq
        %v223 = vshrl.u32 %v222, 7
        %v224 = vsub.s32 1, %v223
        %v225 = vrot.slane %v151, %v224
        %v226 = vlaneseq
        %v227 = vshrl.u32 %v226, 7
        %v228 = vsub.s32 2, %v227
        %v229 = vrot.slane %v151, %v228
        %v230 = vlaneseq
        %v231 = vshrl.u32 %v230, 7
        %v232 = vsub.s32 3, %v231
        %v233 = vrot.slane %v151, %v232
        %v248 = vlaneseq
        %v249 = vshrl.u32 %v248, 7
        %v250 = vsub.s32 0, %v249
        %v251 = vrot.slane %v158, %v250
        %v252 = vlaneseq
        %v253 = vshrl.u32 %v252, 7
        %v254 = vsub.s32 1, %v253
        %v255 = vrot.slane %v158, %v254
        %v256 = vlaneseq
        %v257 = vshrl.u32 %v256, 7
        %v258 = vsub.s32 2, %v257
        %v259 = vrot.slane %v158, %v258
        %v260 = vlaneseq
        %v261 = vshrl.u32 %v260, 7
        %v262 = vsub.s32 3, %v261
        %v263 = vrot.slane %v158, %v262
        %v264 = vlaneseq
        %v265 = vshrl.u32 %v264, 7
        %v266 = vsub.s32 4, %v265
        %v267 = vrot.slane %v158, %v266
        %v268 = vlaneseq
        %v269 = vshrl.u32 %v268, 7
        %v270 = vsub.s32 5, %v269
        %v271 = vrot.slane %v158, %v270
        %v272 = vlaneseq
        %v273 = vshrl.u32 %v272, 7
        %v274 = vsub.s32 6, %v273
        %v275 = vrot.slane %v158, %v274
        %v276 = vlaneseq
        %v277 = vshrl.u32 %v276, 7
        %v278 = vsub.s32 7, %v277
        %v279 = vrot.slane %v158, %v278
        %v280 = vlaneseq
        %v281 = vshrl.u32 %v280, 7
        %v282 = vsub.s32 0, %v281
        %v283 = vrot.slane %v159, %v282
        %v284 = vlaneseq
        %v285 = vshrl.u32 %v284, 7
        %v286 = vsub.s32 1, %v285
        %v287 = vrot.slane %v159, %v286
        %v288 = vlaneseq
        %v289 = vshrl.u32 %v288, 7
        %v290 = vsub.s32 2, %v289
        %v291 = vrot.slane %v159, %v290
        %v292 = vlaneseq
        %v293 = vshrl.u32 %v292, 7
        %v294 = vsub.s32 3, %v293
        %v295 = vrot.slane %v159, %v294
        %v310 = vlaneseq
        %v311 = vshrl.u32 %v310, 7
        %v312 = vsub.s32 0, %v311
        %v313 = vrot.slane %v166, %v312
        %v314 = vlaneseq
        %v315 = vshrl.u32 %v314, 7
        %v316 = vsub.s32 1, %v315
        %v317 = vrot.slane %v166, %v316
        %v318 = vlaneseq
        %v319 = vshrl.u32 %v318, 7
        %v320 = vsub.s32 2, %v319
        %v321 = vrot.slane %v166, %v320
        %v322 = vlaneseq
        %v323 = vshrl.u32 %v322, 7
        %v324 = vsub.s32 3, %v323
        %v325 = vrot.slane %v166, %v324
        %v326 = vlaneseq
        %v327 = vshrl.u32 %v326, 7
        %v328 = vsub.s32 4, %v327
        %v329 = vrot.slane %v166, %v328
        %v330 = vlaneseq
        %v331 = vshrl.u32 %v330, 7
        %v332 = vsub.s32 5, %v331
        %v333 = vrot.slane %v166, %v332
        %v334 = vlaneseq
        %v335 = vshrl.u32 %v334, 7
        %v336 = vsub.s32 6, %v335
        %v337 = vrot.slane %v166, %v336
        %v338 = vlaneseq
        %v339 = vshrl.u32 %v338, 7
        %v340 = vsub.s32 7, %v339
        %v341 = vrot.slane %v166, %v340
        %v342 = vlaneseq
        %v343 = vshrl.u32 %v342, 7
        %v344 = vsub.s32 0, %v343
        %v345 = vrot.slane %v167, %v344
        %v346 = vlaneseq
        %v347 = vshrl.u32 %v346, 7
        %v348 = vsub.s32 1, %v347
        %v349 = vrot.slane %v167, %v348
        %v350 = vlaneseq
        %v351 = vshrl.u32 %v350, 7
        %v352 = vsub.s32 2, %v351
        %v353 = vrot.slane %v167, %v352
        %v354 = vlaneseq
        %v355 = vshrl.u32 %v354, 7
        %v356 = vsub.s32 3, %v355
        %v357 = vrot.slane %v167, %v356
        %v372 = vlaneseq
        %v373 = vshrl.u32 %v372, 7
        %v374 = vsub.s32 0, %v373
        %v375 = vrot.slane %v182, %v374
        %v376 = vlaneseq
        %v377 = vshrl.u32 %v376, 7
        %v378 = vsub.s32 1, %v377
        %v379 = vrot.slane %v182, %v378
        %v380 = vlaneseq
        %v381 = vshrl.u32 %v380, 7
        %v382 = vsub.s32 2, %v381
        %v383 = vrot.slane %v182, %v382
        %v384 = vlaneseq
        %v385 = vshrl.u32 %v384, 7
        %v386 = vsub.s32 3, %v385
        %v387 = vrot.slane %v182, %v386
        %v388 = vlaneseq
        %v389 = vshrl.u32 %v388, 7
        %v390 = vsub.s32 4, %v389
        %v391 = vrot.slane %v182, %v390
        %v392 = vlaneseq
        %v393 = vshrl.u32 %v392, 7
        %v394 = vsub.s32 5, %v393
        %v395 = vrot.slane %v182, %v394
        %v396 = vlaneseq
        %v397 = vshrl.u32 %v396, 7
        %v398 = vsub.s32 6, %v397
        %v399 = vrot.slane %v182, %v398
        %v400 = vlaneseq
        %v401 = vshrl.u32 %v400, 7
        %v402 = vsub.s32 7, %v401
        %v403 = vrot.slane %v182, %v402
        %v404 = vlaneseq
        %v405 = vshrl.u32 %v404, 7
        %v406 = vsub.s32 0, %v405
        %v407 = vrot.slane %v183, %v406
        %v408 = vlaneseq
        %v409 = vshrl.u32 %v408, 7
        %v410 = vsub.s32 1, %v409
        %v411 = vrot.slane %v183, %v410
        %v412 = vlaneseq
        %v413 = vshrl.u32 %v412, 7
        %v414 = vsub.s32 2, %v413
        %v415 = vrot.slane %v183, %v414
        %v416 = vlaneseq
        %v417 = vshrl.u32 %v416, 7
        %v418 = vsub.s32 3, %v417
        %v419 = vrot.slane %v183, %v418
        %vm432 = vcmask 1040384
        %v433 = vsel %vm432, %v189, %v251
        %v434 = vsel %vm432, %v193, %v255
        %v435 = vsel %vm432, %v197, %v259
        %v436 = vsel %vm432, %v201, %v263
        %v437 = vsel %vm432, %v205, %v267
        %v438 = vsel %vm432, %v209, %v271
        %v439 = vsel %vm432, %v213, %v275
        %v440 = vsel %vm432, %v217, %v279
        %v441 = vsel %vm432, %v221, %v283
        %v442 = vsel %vm432, %v225, %v287
        %v443 = vsel %vm432, %v229, %v291
        %v444 = vsel %vm432, %v233, %v295
        %vm445 = vcmask 1041408
        %v446 = vsel %vm445, %v433, %v313
        %v447 = vsel %vm445, %v434, %v317
        %v448 = vsel %vm445, %v435, %v321
        %v449 = vsel %vm445, %v436, %v325
        %v450 = vsel %vm445, %v437, %v329
        %v451 = vsel %vm445, %v438, %v333
        %v452 = vsel %vm445, %v439, %v337
        %v453 = vsel %vm445, %v440, %v341
        %v454 = vsel %vm445, %v441, %v345
        %v455 = vsel %vm445, %v442, %v349
        %v456 = vsel %vm445, %v443, %v353
        %v457 = vsel %vm445, %v444, %v357
        %vm458 = vcmask 1042432
        %v459 = vsel %vm458, %v446, %v375
        %v460 = vsel %vm458, %v447, %v379
        %v461 = vsel %vm458, %v448, %v383
        %v462 = vsel %vm458, %v449, %v387
        %v463 = vsel %vm458, %v450, %v391
        %v464 = vsel %vm458, %v451, %v395
        %v465 = vsel %vm458, %v452, %v399
        %v466 = vsel %vm458, %v453, %v403
        %v467 = vsel %vm458, %v454, %v407
        %v468 = vsel %vm458, %v455, %v411
        %v469 = vsel %vm458, %v456, %v415
        %v470 = vsel %vm458, %v457, %v419
        %v483 = vcombine.low %v459, %v460
        %v484 = vcombine.low %v461, %v462
        %v485 = vcombine.low %v463, %v464
        %v486 = vcombine.low %v465, %v466
        %v487 = vcombine.low %v467, %v468
        %v488 = vcombine.low %v469, %v470
        %495 = vst [vmem:[%s132] sm:$0xff] %v483
        %496 = vst [vmem:[%s132 + $0x8] sm:$0xff] %v484
        %497 = vst [vmem:[%s132 + $0x10] sm:$0xff] %v485
        %498 = vst [vmem:[%s132 + $0x18] sm:$0xff] %v486
        %499 = vst [vmem:[%s132 + $0x20] sm:$0xff] %v487
        %500 = vst [vmem:[%s132 + $0x28] sm:$0xff] %v488
        %s501 = sand.u32 %s52, 1
        %s502 = scalar_lea.sflag [#allocation4], %s501
        %s503 = sand.u32 %s52, 1
        %s504 = smul.addr %s503, 48
        %s505 = scalar_lea.vmem [#allocation5], %s504
        // Predicated region
        $region29: #{tpu_custom_call.1} parent=23 // pred_check
          %p506 = pneg %p62
        $region30: #{tpu_custom_call.1} parent=23 // pred_check_branch
          %508 = sbr.rel (%p506) target = $region32
        $region31: #{tpu_custom_call.1} parent=23 // pred_region
          %s509 = smul.u32 12, %s18
          %s511 = ssub.s32 768, 768
          %512 = vsyncadd %s502, %s511
          %s513 = smul.addr %s509, 64
          %s514 = scalar_lea.hbm %s1, %s513
          %s516 = sshll.u32 %s505, 4
          %s517 = int_to_ptr.vmem [resolvable:$true] %s516
          %519 = dma.vmem_to_hbm [thread:$0]  %s517, 768, %s514, %s502
        $region32: #{tpu_custom_call.1} parent=23 // pred_fallthru
          _
      $region24: #{tpu_custom_call.1} parent=5 // pred_fallthru
        _
      %p520 = scmp.le.s32.totalorder 2, %s13
      // Predicated region
      $region33: #{tpu_custom_call.1} parent=5 // pred_check
        %p521 = pneg %p520
      $region34: #{tpu_custom_call.1} parent=5 // pred_check_branch
        %523 = sbr.rel (%p521) target = $region36
      $region35: #{tpu_custom_call.1} parent=5 // pred_region
        %s524 = ssub.s32 %s13, 2
        // Predicated region
        $region37: #{tpu_custom_call.1} parent=35 // pred_check
          %p525 = pneg %p68
        $region38: #{tpu_custom_call.1} parent=35 // pred_check_branch
          %527 = sbr.rel (%p525) target = $region40
        $region39: #{tpu_custom_call.1} parent=35 // pred_region
          %s528 = sand.u32 %s53, 1
          %s529 = scalar_lea.sflag [#allocation4], %s528
          %s530 = sand.u32 %s53, 1
          %s531 = smul.addr %s530, 48
          %s532 = scalar_lea.vmem [#allocation5], %s531
          %533 = dma.done %s529, 768
        $region40: #{tpu_custom_call.1} parent=35 // pred_fallthru
          _
      $region36: #{tpu_custom_call.1} parent=5 // pred_fallthru
        _
    $region6: #{tpu_custom_call.1} parent=1 // loop_footer
      %s17 = sadd.s32 1, %s13
    $region7: #{tpu_custom_call.1} parent=1 // loop_footer_branch
      %12 = sbr.rel target = $region3
    $region8: #{tpu_custom_call.1} parent=1 // loop_exit
      _
    %534 = vsyncpa [#allocation3], 1
    %s535 = scalar_lea.sflag [#allocation3], 1
    %536 = vsyncpa %s535, 1
    %537 = vsyncpa [#allocation4], 1
    %s538 = scalar_lea.sflag [#allocation4], 1
    %539 = vsyncpa %s538, 1

</llo_original>
